<compile_context>
chip_gen: v6e
topology: v6e:2x2x1
jax: 0.10.0
libtpu: 0.0.40
codegen_flags: <defaults>
</compile_context>

<pallas_src>
import jax
import jax.numpy as jnp
import numpy as np
from jax.experimental import pallas as pl
from jax.experimental.pallas import tpu as pltpu


# ----------------------------- Pallas kernel ------------------------------- #

def _cfg_inner_kernel(xscale_ref, lrscale_ref,   # SMEM (B,) f32: 1/sqrt(sigma^2+1) each
                      feat_ref,                  # VMEM (B, 2C, HW), storage dtype
                      w_ref,                     # VMEM (C_out, 2C) f32, un-split weight
                      bias_ref,                  # VMEM (B, C_out, 1) f32, CFG-combined bias
                      out_ref):                  # VMEM (B, C_out, HW), storage dtype
    B, K, _ = feat_ref.shape                     # K = 2*C
    C = K // 2
    w = w_ref[...]                               # loaded once, resident
    # Row selector for the x-rows vs. low_res-rows of the merged operand (hoisted).
    col = jax.lax.broadcasted_iota(jnp.int32, (1, K), 1)

    for b in range(B):                           # B is tiny & static -> fully unrolled
        # Fold per-sample sigma conditioning into the tiny weight instead of the big
        # activations:  W @ (s * x) == (s * W) @ x.
        srow = jnp.where(col < C, xscale_ref[b], lrscale_ref[b])          # (1, 2C)
        # Upcast after load: no-op for f32 storage, required on v5e for bf16 storage.
        fb = feat_ref[b].astype(jnp.float32)                              # (2C, HW)
        mix = jnp.dot(w * srow, fb, preferred_element_type=jnp.float32)   # (C_out, HW)
        out_ref[b] = (mix + bias_ref[b]).astype(out_ref.dtype)


# ----------------------------- wrapper (glue) ------------------------------- #

def fused_cfg_inner_apply(wmix, x, low_res, xscale, lrscale, bias_eff,
                          *, storage_dtype=jnp.float32):
    """Single pallas_call (no grid) over the un-doubled, whole batch."""
    B, C, H, W = x.shape
    HW = H * W
    C_out = wmix.shape[0]

    # One merged (B, 2C, HW) operand: single K=8 contraction, single input stream.
    feat = jnp.concatenate(
        [x.reshape(B, C, HW), low_res.reshape(B, C, HW)], axis=1
    ).astype(storage_dtype)
    w = wmix.astype(jnp.float32)                           # (C_out, 2C), kept un-split
    beff = bias_eff.reshape(B, C_out, 1).astype(jnp.float32)
    xs = xscale.astype(jnp.float32)
    ls = lrscale.astype(jnp.float32)

    out = pl.pallas_call(
        _cfg_inner_kernel,
        out_shape=jax.ShapeDtypeStruct((B, C_out, HW), storage_dtype),
        in_specs=[
            pl.BlockSpec(memory_space=pltpu.MemorySpace.SMEM),   # xscale  (B,)
            pl.BlockSpec(memory_space=pltpu.MemorySpace.SMEM),   # lrscale (B,)
            pl.BlockSpec(memory_space=pltpu.MemorySpace.VMEM),   # feat    (B, 2C, HW)
            pl.BlockSpec(memory_space=pltpu.MemorySpace.VMEM),   # wmix    (C_out, 2C)
            pl.BlockSpec(memory_space=pltpu.MemorySpace.VMEM),   # bias    (B, C_out, 1)
        ],
        out_specs=pl.BlockSpec(memory_space=pltpu.MemorySpace.VMEM),
    )(xs, ls, feat, w, beff)
    return out.reshape(B, C_out, H, W)


class CFGUpscaler:
    """JAX/Pallas port of the PyTorch CFGUpscaler forward pass (fused CFG).

    NOTE: the CFG combine `uncond + (cond - uncond) * scale` is folded into a
    per-sample (C_out,) bias.  This is exact ONLY because this synthetic inner
    model's channel-mix term is conditioning-independent; a real conditioned
    inner network would require running both conditionings through the kernel.
    """

    def __init__(self, params, uc, cond_scale, *, storage_dtype=jnp.float32):
        self.params = params          # (wmix (C_out, 2C), wc (C_out, D), bias (C_out, 1))
        self.uc = uc
        # Must be a static Python float: the `in (0.0, 1.0)` branch is Python-level.
        self.cond_scale = float(cond_scale)
        self.storage_dtype = storage_dtype

    def __call__(self, x, sigma, low_res, low_res_sigma, c):
        wmix, wc, bias = self.params
        bias_row = bias.reshape(1, -1)                               # (1, C_out)

        # Tiny conditioning projections computed in XLA (B x C_out each).
        def cond_bias(cvec):
            return cvec.astype(jnp.float32) @ wc.T + bias_row        # (B, C_out)

        if self.cond_scale == 0.0:
            bias_eff = cond_bias(self.uc[0])
        elif self.cond_scale == 1.0:
            bias_eff = cond_bias(c[0])
        else:
            # Fused CFG: conditioning enters only through the bias -> exact collapse.
            cb_u = cond_bias(self.uc[0])
            cb_c = cond_bias(c[0])
            bias_eff = cb_u + (cb_c - cb_u) * self.cond_scale

        xscale = jax.lax.rsqrt(sigma.astype(jnp.float32) ** 2 + 1.0)           # (B,)
        lrscale = jax.lax.rsqrt(low_res_sigma.astype(jnp.float32) ** 2 + 1.0)  # (B,)
        return fused_cfg_inner_apply(wmix, x, low_res, xscale, lrscale, bias_eff,
                                     storage_dtype=self.storage_dtype)


# ----------------------------- pure-JAX reference --------------------------- #
# Literal port of the PyTorch module semantics: concat-doubled batch through the
# inner model, chunk, then uncond + (cond - uncond) * cond_scale.

def inner_model_ref(params, x, sigma, *, low_res, low_res_sigma, c):
    wmix, wc, bias = params
    cvec = c[0]
    xs = x * (1.0 / jnp.sqrt(sigma ** 2 + 1.0))[:, None, None, None]
    lrs = low_res * (1.0 / jnp.sqrt(low_res_sigma ** 2 + 1.0))[:, None, None, None]
    feat = jnp.concatenate([xs, lrs], axis=1)                    # (B, 2C, H, W)
    mix = jnp.einsum("oc,bchw->bohw", wmix, feat)
    cb = jnp.einsum("od,bd->bo", wc, cvec)
    return mix + cb[:, :, None, None] + bias.reshape(1, -1, 1, 1)


def cfg_upscaler_ref(params, uc, cond_scale, x, sigma, low_res, low_res_sigma, c):
    if cond_scale in (0.0, 1.0):
        c_in = uc if cond_scale == 0.0 else c
        return inner_model_ref(params, x, sigma, low_res=low_res,
                               low_res_sigma=low_res_sigma, c=c_in)
    x_in = jnp.concatenate([x] * 2)
    sigma_in = jnp.concatenate([sigma] * 2)
    low_res_in = jnp.concatenate([low_res] * 2)
    low_res_sigma_in = jnp.concatenate([low_res_sigma] * 2)
    c_in = [jnp.concatenate([u, cc]) for u, cc in zip(uc, c)]
    out = inner_model_ref(params, x_in, sigma_in, low_res=low_res_in,
                          low_res_sigma=low_res_sigma_in, c=c_in)
    uncond, cond = jnp.split(out, 2, axis=0)
    return uncond + (cond - uncond) * cond_scale


# ------------------------------------ main ---------------------------------- #

if __name__ == "__main__":
    B, C, H, W, D = 2, 4, 16, 16, 32
    C_OUT = 4
    cond_scale = 7.5

    key = jax.random.PRNGKey(0)
    kx, klr, ks, kls, kc, kuc, kw1, kw2, kb = jax.random.split(key, 9)

    x = jax.random.normal(kx, (B, C, H, W), jnp.float32)
    low_res = jax.random.normal(klr, (B, C, H, W), jnp.float32)
    sigma = jax.random.uniform(ks, (B,), jnp.float32, 0.5, 2.0)
    low_res_sigma = jax.random.uniform(kls, (B,), jnp.float32, 0.1, 1.0)
    c = [jax.random.normal(kc, (B, D), jnp.float32)]
    uc = [jax.random.normal(kuc, (B, D), jnp.float32)]

    # deterministic synthetic inner-model parameters
    wmix = jax.random.normal(kw1, (C_OUT, 2 * C), jnp.float32) * 0.3
    wc = jax.random.normal(kw2, (C_OUT, D), jnp.float32) * 0.1
    bias = jax.random.normal(kb, (C_OUT, 1), jnp.float32) * 0.05
    params = (wmix, wc, bias)

    # CFG path (cond_scale != 0, 1) — single fused kernel, single grid step, f32 storage.
    upscaler = CFGUpscaler(params, uc, cond_scale)
    out = jax.block_until_ready(upscaler(x, sigma, low_res, low_res_sigma, c))
    ref = cfg_upscaler_ref(params, uc, cond_scale, x, sigma, low_res,
                           low_res_sigma, c)
    np.testing.assert_allclose(np.asarray(out), np.asarray(ref),
                               rtol=1e-4, atol=1e-4)
    assert out.shape == (B, C_OUT, H, W)

    # Pass-through path (cond_scale == 1.0) — same kernel, single conditioning.
    upscaler1 = CFGUpscaler(params, uc, 1.0)
    out1 = jax.block_until_ready(upscaler1(x, sigma, low_res, low_res_sigma, c))
    ref1 = cfg_upscaler_ref(params, uc, 1.0, x, sigma, low_res, low_res_sigma, c)
    np.testing.assert_allclose(np.asarray(out1), np.asarray(ref1),
                               rtol=1e-4, atol=1e-4)

    # bf16 storage variant (v6e/v7x HBM-byte saver): same kernel body, f32 compute,
    # loose tolerance purely due to bf16 storage quantization.
    upscaler_bf = CFGUpscaler(params, uc, cond_scale, storage_dtype=jnp.bfloat16)
    out_bf = jax.block_until_ready(upscaler_bf(x, sigma, low_res, low_res_sigma, c))
    np.testing.assert_allclose(np.asarray(out_bf.astype(jnp.float32)), np.asarray(ref),
                               rtol=5e-2, atol=1e-1)

    print("KERNEL_OK")
</pallas_src>

<mosaic_0001>
module attributes {stable_mosaic.version = 11 : i64} {
  func.func @_cfg_inner_kernel(%arg0: memref<2xf32, #tpu.memory_space<smem>>, %arg1: memref<2xf32, #tpu.memory_space<smem>>, %arg2: memref<2x8x256xf32, #tpu.memory_space<vmem>>, %arg3: memref<4x8xf32, #tpu.memory_space<vmem>>, %arg4: memref<2x4x1xf32, #tpu.memory_space<vmem>>, %arg5: memref<2x4x256xf32, #tpu.memory_space<vmem>>) attributes {dimension_semantics = [], scalar_prefetch = 0 : i64, scratch_operands = 0 : i64, tpu.core_type = #tpu.core_type<tc>} {
    %c0 = arith.constant 0 : index
    %c0_0 = arith.constant 0 : index
    %0 = vector.load %arg3[%c0, %c0_0] : memref<4x8xf32, #tpu.memory_space<vmem>>, vector<4x8xf32>
    %1 = tpu.iota {dimensions = array<i32: 1>} : vector<1x8xi32>
    %c4_i32 = arith.constant 4 : i32
    %2 = vector.broadcast %c4_i32 : i32 to vector<1x8xi32>
    %3 = arith.cmpi slt, %1, %2 : vector<1x8xi32>
    %c0_1 = arith.constant 0 : index
    %4 = memref.load %arg0[%c0_1] : memref<2xf32, #tpu.memory_space<smem>>
    %c0_2 = arith.constant 0 : index
    %5 = memref.load %arg1[%c0_2] : memref<2xf32, #tpu.memory_space<smem>>
    %6 = vector.broadcast %4 : f32 to vector<1x8xf32>
    %7 = vector.broadcast %5 : f32 to vector<1x8xf32>
    %8 = arith.select %3, %6, %7 : vector<1x8xi1>, vector<1x8xf32>
    %c0_3 = arith.constant 0 : index
    %c0_4 = arith.constant 0 : index
    %c0_5 = arith.constant 0 : index
    %9 = vector.load %arg2[%c0_3, %c0_4, %c0_5] : memref<2x8x256xf32, #tpu.memory_space<vmem>>, vector<1x8x256xf32>
    %10 = vector.shape_cast %9 : vector<1x8x256xf32> to vector<8x256xf32>
    %11 = vector.broadcast %8 : vector<1x8xf32> to vector<4x8xf32>
    %12 = arith.mulf %0, %11 : vector<4x8xf32>
    %cst = arith.constant dense<0.000000e+00> : vector<4x256xf32>
    %13 = tpu.matmul %12, %10, %cst {dimension_numbers = #tpu.dot_dimension_numbers<[1], [0], [0], [1], [0, 0, 1, 1], [], []>} : vector<4x8xf32>, vector<8x256xf32>, vector<4x256xf32> -> vector<4x256xf32>
    %c0_6 = arith.constant 0 : index
    %c0_7 = arith.constant 0 : index
    %c0_8 = arith.constant 0 : index
    %14 = vector.load %arg4[%c0_6, %c0_7, %c0_8] : memref<2x4x1xf32, #tpu.memory_space<vmem>>, vector<1x4x1xf32>
    %15 = vector.shape_cast %14 : vector<1x4x1xf32> to vector<4x1xf32>
    %16 = vector.broadcast %15 : vector<4x1xf32> to vector<4x256xf32>
    %17 = arith.addf %13, %16 : vector<4x256xf32>
    %c0_9 = arith.constant 0 : index
    %c0_10 = arith.constant 0 : index
    %c0_11 = arith.constant 0 : index
    %18 = vector.load %arg5[%c0_9, %c0_10, %c0_11] : memref<2x4x256xf32, #tpu.memory_space<vmem>>, vector<1x4x256xf32>
    %19 = vector.shape_cast %18 : vector<1x4x256xf32> to vector<4x256xf32>
    %20 = vector.shape_cast %17 : vector<4x256xf32> to vector<1x4x256xf32>
    tpu.vector_store %arg5[%c0_9, %c0_10, %c0_11], %20 {strides = array<i32>} : memref<2x4x256xf32, #tpu.memory_space<vmem>>, vector<1x4x256xf32>,
    %c4_i32_12 = arith.constant 4 : i32
    %21 = vector.broadcast %c4_i32_12 : i32 to vector<1x8xi32>
    %22 = arith.cmpi slt, %1, %21 : vector<1x8xi32>
    %c1 = arith.constant 1 : index
    %23 = memref.load %arg0[%c1] : memref<2xf32, #tpu.memory_space<smem>>
    %c1_13 = arith.constant 1 : index
    %24 = memref.load %arg1[%c1_13] : memref<2xf32, #tpu.memory_space<smem>>
    %25 = vector.broadcast %23 : f32 to vector<1x8xf32>
    %26 = vector.broadcast %24 : f32 to vector<1x8xf32>
    %27 = arith.select %22, %25, %26 : vector<1x8xi1>, vector<1x8xf32>
    %c1_14 = arith.constant 1 : index
    %c0_15 = arith.constant 0 : index
    %c0_16 = arith.constant 0 : index
    %28 = vector.load %arg2[%c1_14, %c0_15, %c0_16] : memref<2x8x256xf32, #tpu.memory_space<vmem>>, vector<1x8x256xf32>
    %29 = vector.shape_cast %28 : vector<1x8x256xf32> to vector<8x256xf32>
    %30 = vector.broadcast %27 : vector<1x8xf32> to vector<4x8xf32>
    %31 = arith.mulf %0, %30 : vector<4x8xf32>
    %cst_17 = arith.constant dense<0.000000e+00> : vector<4x256xf32>
    %32 = tpu.matmul %31, %29, %cst_17 {dimension_numbers = #tpu.dot_dimension_numbers<[1], [0], [0], [1], [0, 0, 1, 1], [], []>} : vector<4x8xf32>, vector<8x256xf32>, vector<4x256xf32> -> vector<4x256xf32>
    %c1_18 = arith.constant 1 : index
    %c0_19 = arith.constant 0 : index
    %c0_20 = arith.constant 0 : index
    %33 = vector.load %arg4[%c1_18, %c0_19, %c0_20] : memref<2x4x1xf32, #tpu.memory_space<vmem>>, vector<1x4x1xf32>
    %34 = vector.shape_cast %33 : vector<1x4x1xf32> to vector<4x1xf32>
    %35 = vector.broadcast %34 : vector<4x1xf32> to vector<4x256xf32>
    %36 = arith.addf %32, %35 : vector<4x256xf32>
    %c1_21 = arith.constant 1 : index
    %c0_22 = arith.constant 0 : index
    %c0_23 = arith.constant 0 : index
    %37 = vector.load %arg5[%c1_21, %c0_22, %c0_23] : memref<2x4x256xf32, #tpu.memory_space<vmem>>, vector<1x4x256xf32>
    %38 = vector.shape_cast %37 : vector<1x4x256xf32> to vector<4x256xf32>
    %39 = vector.shape_cast %36 : vector<4x256xf32> to vector<1x4x256xf32>
    tpu.vector_store %arg5[%c1_21, %c0_22, %c0_23], %39 {strides = array<i32>} : memref<2x4x256xf32, #tpu.memory_space<vmem>>, vector<1x4x256xf32>,
    return
  }
}

</mosaic_0001>

<llo_original>
// kernel: tpu_custom_call.1
$region0: #{tpu_custom_call.1}
  #allocation0 [shape = 'u32[]', space=smem, size = 0x4, offset = 0x4, fixed_abs, tag = 'smem constant byte address 0x4 - core index']
  #allocation1 [shape = 'u32[144,128]{1,0:T(1,128)}', space=vmem, size = 0x12000, scoped, tag = 'internal scratch']
  %s0 = inlined_call_operand.vmem [shape: f32[2], index: 0, kind: input, shape index: {}]
  %s1 = inlined_call_operand.vmem [shape: f32[2], index: 1, kind: input, shape index: {}]
  %s2 = inlined_call_operand.hbm [shape: f32[2,8,256], index: 2, kind: input, shape index: {}]
  %s3 = inlined_call_operand.vmem [shape: f32[4,8], index: 3, kind: input, shape index: {}]
  %s4 = inlined_call_operand.vmem [shape: f32[2,4,1], index: 4, kind: input, shape index: {}]
  %s5 = inlined_call_operand.hbm [shape: f32[2,4,256], index: 5, kind: output, shape index: {}]
  %s6 = sld [smem:[#allocation0]]
  $region42: #{tpu_custom_call.1} parent=0
    _
  %s8 = ssub.s32 1, %s6
  %s9 = scalar_select 0, %s8, %s6
  $region1: #{tpu_custom_call.1} parent=0
    #allocation2 [shape = 'u8[512]{0}', space=smem, size = 0x200, scoped, tag = 'input window, operand 0, single buffered']
    #allocation3 [shape = 's32[1]{0}', space=sflag, size = 0x4, scoped, tag = 'scoped memory for tpu_custom_call.1']
    #allocation4 [shape = 's32[1]{0}', space=sflag, size = 0x4, scoped, tag = 'scoped memory for tpu_custom_call.1']
    #allocation5 [shape = 's32[1]{0}', space=sflag, size = 0x4, scoped, tag = 'scoped memory for tpu_custom_call.1']
    #allocation6 [shape = 'u8[512]{0}', space=smem, size = 0x200, scoped, tag = 'input window, operand 1, single buffered']
    #allocation7 [shape = 's32[1]{0}', space=sflag, size = 0x4, scoped, tag = 'scoped memory for tpu_custom_call.1']
    #allocation8 [shape = 'u8[16384]{0}', space=vmem, size = 0x4000, scoped, tag = 'input window, operand 2, single buffered']
    #allocation9 [shape = 'u8[8192]{0}', space=vmem, size = 0x2000, scoped, tag = 'output window, operand 0, single buffered']
    %10 = vsyncpa [#allocation5], 0
    %11 = vsyncpa [#allocation7], 0
    %12 = vsyncpa [#allocation3], 0
    %13 = vsyncpa [#allocation4], 0
    // Predicated region
    $region2: #{tpu_custom_call.1} parent=1 // pred_check
      _
    $region3: #{tpu_custom_call.1} parent=1 // pred_check_branch
      %15 = sbr.rel (0) target = $region5
    $region4: #{tpu_custom_call.1} parent=1 // pred_region
      %s17 = ssub.s32 16, 16
      %18 = vsyncadd [#allocation5], %s17
      %s20 = sshll.u32 %s0, 4
      %s21 = int_to_ptr.vmem [resolvable:$true] %s20
      %23 = dma.vmem_to_smem %s21, 16, [#allocation2], [#allocation5]
    $region5: #{tpu_custom_call.1} parent=1 // pred_fallthru
      _
    // Predicated region
    $region6: #{tpu_custom_call.1} parent=1 // pred_check
      _
    $region7: #{tpu_custom_call.1} parent=1 // pred_check_branch
      %25 = sbr.rel (0) target = $region9
    $region8: #{tpu_custom_call.1} parent=1 // pred_region
      %s27 = ssub.s32 16, 16
      %28 = vsyncadd [#allocation7], %s27
      %s30 = sshll.u32 %s1, 4
      %s31 = int_to_ptr.vmem [resolvable:$true] %s30
      %33 = dma.vmem_to_smem %s31, 16, [#allocation6], [#allocation7]
    $region9: #{tpu_custom_call.1} parent=1 // pred_fallthru
      _
    // Predicated region
    $region10: #{tpu_custom_call.1} parent=1 // pred_check
      _
    $region11: #{tpu_custom_call.1} parent=1 // pred_check_branch
      %35 = sbr.rel (0) target = $region13
    $region12: #{tpu_custom_call.1} parent=1 // pred_region
      %s37 = ssub.s32 512, 512
      %38 = vsyncadd [#allocation3], %s37
      %s39 = sshll.u32 [#allocation8], 4
      %s40 = int_to_ptr.vmem [resolvable:$true] %s39
      %45 = dma.hbm_to_vmem [thread:$0]  %s2, 512, %s40, [#allocation3], 256, 256, 16
    $region13: #{tpu_custom_call.1} parent=1 // pred_fallthru
      _
    // Predicated region
    $region14: #{tpu_custom_call.1} parent=1 // pred_check
      _
    $region15: #{tpu_custom_call.1} parent=1 // pred_check_branch
      %47 = sbr.rel (0) target = $region17
    $region16: #{tpu_custom_call.1} parent=1 // pred_region
      _
    $region17: #{tpu_custom_call.1} parent=1 // pred_fallthru
      _
    // Predicated region
    $region18: #{tpu_custom_call.1} parent=1 // pred_check
      _
    $region19: #{tpu_custom_call.1} parent=1 // pred_check_branch
      %49 = sbr.rel (0) target = $region21
    $region20: #{tpu_custom_call.1} parent=1 // pred_region
      _
    $region21: #{tpu_custom_call.1} parent=1 // pred_fallthru
      _
    // Predicated region
    $region22: #{tpu_custom_call.1} parent=1 // pred_check
      _
    $region23: #{tpu_custom_call.1} parent=1 // pred_check_branch
      %51 = sbr.rel (0) target = $region25
    $region24: #{tpu_custom_call.1} parent=1 // pred_region
      %52 = dma.done [#allocation5], 16
    $region25: #{tpu_custom_call.1} parent=1 // pred_fallthru
      _
    // Predicated region
    $region26: #{tpu_custom_call.1} parent=1 // pred_check
      _
    $region27: #{tpu_custom_call.1} parent=1 // pred_check_branch
      %54 = sbr.rel (0) target = $region29
    $region28: #{tpu_custom_call.1} parent=1 // pred_region
      %55 = dma.done [#allocation7], 16
    $region29: #{tpu_custom_call.1} parent=1 // pred_fallthru
      _
    // Predicated region
    $region30: #{tpu_custom_call.1} parent=1 // pred_check
      _
    $region31: #{tpu_custom_call.1} parent=1 // pred_check_branch
      %57 = sbr.rel (0) target = $region33
    $region32: #{tpu_custom_call.1} parent=1 // pred_region
      %58 = dma.done [#allocation3], 512
    $region33: #{tpu_custom_call.1} parent=1 // pred_fallthru
      _
    %59 = sfence
    %v60 = vld [vmem:[%s3] sm:$0xf]
    %v61 = vlaneseq
    %v62 = vand.u32 %v61, 127
    %vm63 = vcmp.lt.s32.totalorder %v62, 4
    %s64 = sld [smem:[#allocation2]]
    %s65 = sld [smem:[#allocation6]]
    %v66 = vstv %s64
    %v67 = vstv %s65
    %v68 = vsel %vm63, %v66, %v67
    %v69 = vld [vmem:[#allocation8] sm:$0xff]
    %v70 = vld [vmem:[#allocation8 + $0x8] sm:$0xff]
    %v71 = vmul.f32 %v60, %v68
    %v72 = vld [vmem:[%s4] sm:$0xf]
    %74 = vset.pattern.permute.xlu0 0
    %75 = vperm.xlu0 %74, %v72
    %v76 = vpop.permute.xlu0 %75
    %vm78 = vcmask 64512
    %v80 = vsel %vm78, %v71, 0
    %82 = vmatprep.subr.mxu0 0.0
    %83 = vmatpush1.msra.mxu0 0.0
    %84 = vmatprep.subr.mxu0 0.0
    %85 = vmatpush1.msra.mxu0 0.0
    %86 = vmatprep.subr.mxu0 0.0
    %87 = vmatpush1.msra.mxu0 0.0
    %88 = vmatprep.subr.mxu0 0.0
    %89 = vmatpush1.msra.mxu0 0.0
    %90 = vmatprep.subr.mxu0 0.0
    %91 = vmatpush1.msra.mxu0 0.0
    %92 = vmatprep.subr.mxu0 0.0
    %93 = vmatpush1.msra.mxu0 0.0
    %94 = vmatprep.subr.mxu0 0.0
    %95 = vmatpush1.msra.mxu0 0.0
    %96 = vmatprep.subr.mxu0 0.0
    %97 = vmatpush1.msra.mxu0 0.0
    %98 = vmatprep.subr.mxu0 0.0
    %99 = vmatpush1.msra.mxu0 0.0
    %100 = vmatprep.subr.mxu0 0.0
    %101 = vmatpush1.msra.mxu0 0.0
    %102 = vmatprep.subr.mxu0 0.0
    %103 = vmatpush1.msra.mxu0 0.0
    %104 = vmatprep.subr.mxu0 0.0
    %105 = vmatpush1.msra.mxu0 0.0
    %106 = vmatprep.subr.mxu0 0.0
    %107 = vmatpush1.msra.mxu0 0.0
    %108 = vmatprep.subr.mxu0 0.0
    %109 = vmatpush1.msra.mxu0 0.0
    %110 = vmatprep.subr.mxu0 0.0
    %111 = vmatpush1.msra.mxu0 0.0
    %112 = vmatprep.subr.mxu0 %v70
    %113 = vmatpush1.msra.mxu0 %v69
    %114 = vmatprep.subr.mxu0 0.0
    %115 = vmatpush2.msra.mxu0 0.0
    %116 = vmatprep.subr.mxu0 0.0
    %117 = vmatpush2.msra.mxu0 0.0
    %118 = vmatprep.subr.mxu0 0.0
    %119 = vmatpush2.msra.mxu0 0.0
    %120 = vmatprep.subr.mxu0 0.0
    %121 = vmatpush2.msra.mxu0 0.0
    %122 = vmatprep.subr.mxu0 0.0
    %123 = vmatpush2.msra.mxu0 0.0
    %124 = vmatprep.subr.mxu0 0.0
    %125 = vmatpush2.msra.mxu0 0.0
    %126 = vmatprep.subr.mxu0 0.0
    %127 = vmatpush2.msra.mxu0 0.0
    %128 = vmatprep.subr.mxu0 0.0
    %129 = vmatpush2.msra.mxu0 0.0
    %130 = vmatprep.subr.mxu0 0.0
    %131 = vmatpush2.msra.mxu0 0.0
    %132 = vmatprep.subr.mxu0 0.0
    %133 = vmatpush2.msra.mxu0 0.0
    %134 = vmatprep.subr.mxu0 0.0
    %135 = vmatpush2.msra.mxu0 0.0
    %136 = vmatprep.subr.mxu0 0.0
    %137 = vmatpush2.msra.mxu0 0.0
    %138 = vmatprep.subr.mxu0 0.0
    %139 = vmatpush2.msra.mxu0 0.0
    %140 = vmatprep.subr.mxu0 0.0
    %141 = vmatpush2.msra.mxu0 0.0
    %142 = vmatprep.subr.mxu0 0.0
    %143 = vmatpush2.msra.mxu0 0.0
    %144 = vmatprep.subr.mxu0 0.0
    %145 = vmatpush2.msra.mxu0 0.0
    %146 = vmatprep.mubr.f32.mxu0 0.0
    %147 = vmatmul.mubr.f32.gmra.mxu0 %v80
    %v148 = vpop.f32.mrf.mxu0
    %v149 = vadd.f32 %v76, %v148
    %v150 = vpop.f32.mrf.mxu0
    %v151 = vadd.f32 %v76, %v150
    %152 = vdwg.mxu0
    %v155 = vcombine.low %v149, %v151
    %157 = vst [vmem:[#allocation9] sm:$0xff] %v155
    %s158 = sld [smem:[#allocation2 + $0x1]]
    %s159 = sld [smem:[#allocation6 + $0x1]]
    %v160 = vstv %s158
    %v161 = vstv %s159
    %v162 = vsel %vm63, %v160, %v161
    %s163 = scalar_lea.vmem [#allocation8], 16
    %v164 = vld [vmem:[%s163] sm:$0xff]
    %v165 = vld [vmem:[%s163 + $0x8] sm:$0xff]
    %v166 = vmul.f32 %v60, %v162
    %s167 = scalar_lea.vmem %s4, 4
    %v168 = vld [vmem:[%s167] sm:$0xf]
    %170 = vset.pattern.permute.xlu0 0
    %171 = vperm.xlu0 %170, %v168
    %v172 = vpop.permute.xlu0 %171
    %v175 = vsel %vm78, %v166, 0
    %177 = vmatprep.subr.mxu0 0.0
    %178 = vmatpush1.msra.mxu0 0.0
    %179 = vmatprep.subr.mxu0 0.0
    %180 = vmatpush1.msra.mxu0 0.0
    %181 = vmatprep.subr.mxu0 0.0
    %182 = vmatpush1.msra.mxu0 0.0
    %183 = vmatprep.subr.mxu0 0.0
    %184 = vmatpush1.msra.mxu0 0.0
    %185 = vmatprep.subr.mxu0 0.0
    %186 = vmatpush1.msra.mxu0 0.0
    %187 = vmatprep.subr.mxu0 0.0
    %188 = vmatpush1.msra.mxu0 0.0
    %189 = vmatprep.subr.mxu0 0.0
    %190 = vmatpush1.msra.mxu0 0.0
    %191 = vmatprep.subr.mxu0 0.0
    %192 = vmatpush1.msra.mxu0 0.0
    %193 = vmatprep.subr.mxu0 0.0
    %194 = vmatpush1.msra.mxu0 0.0
    %195 = vmatprep.subr.mxu0 0.0
    %196 = vmatpush1.msra.mxu0 0.0
    %197 = vmatprep.subr.mxu0 0.0
    %198 = vmatpush1.msra.mxu0 0.0
    %199 = vmatprep.subr.mxu0 0.0
    %200 = vmatpush1.msra.mxu0 0.0
    %201 = vmatprep.subr.mxu0 0.0
    %202 = vmatpush1.msra.mxu0 0.0
    %203 = vmatprep.subr.mxu0 0.0
    %204 = vmatpush1.msra.mxu0 0.0
    %205 = vmatprep.subr.mxu0 0.0
    %206 = vmatpush1.msra.mxu0 0.0
    %207 = vmatprep.subr.mxu0 %v165
    %208 = vmatpush1.msra.mxu0 %v164
    %209 = vmatprep.subr.mxu0 0.0
    %210 = vmatpush2.msra.mxu0 0.0
    %211 = vmatprep.subr.mxu0 0.0
    %212 = vmatpush2.msra.mxu0 0.0
    %213 = vmatprep.subr.mxu0 0.0
    %214 = vmatpush2.msra.mxu0 0.0
    %215 = vmatprep.subr.mxu0 0.0
    %216 = vmatpush2.msra.mxu0 0.0
    %217 = vmatprep.subr.mxu0 0.0
    %218 = vmatpush2.msra.mxu0 0.0
    %219 = vmatprep.subr.mxu0 0.0
    %220 = vmatpush2.msra.mxu0 0.0
    %221 = vmatprep.subr.mxu0 0.0
    %222 = vmatpush2.msra.mxu0 0.0
    %223 = vmatprep.subr.mxu0 0.0
    %224 = vmatpush2.msra.mxu0 0.0
    %225 = vmatprep.subr.mxu0 0.0
    %226 = vmatpush2.msra.mxu0 0.0
    %227 = vmatprep.subr.mxu0 0.0
    %228 = vmatpush2.msra.mxu0 0.0
    %229 = vmatprep.subr.mxu0 0.0
    %230 = vmatpush2.msra.mxu0 0.0
    %231 = vmatprep.subr.mxu0 0.0
    %232 = vmatpush2.msra.mxu0 0.0
    %233 = vmatprep.subr.mxu0 0.0
    %234 = vmatpush2.msra.mxu0 0.0
    %235 = vmatprep.subr.mxu0 0.0
    %236 = vmatpush2.msra.mxu0 0.0
    %237 = vmatprep.subr.mxu0 0.0
    %238 = vmatpush2.msra.mxu0 0.0
    %239 = vmatprep.subr.mxu0 0.0
    %240 = vmatpush2.msra.mxu0 0.0
    %241 = vmatprep.mubr.f32.mxu0 0.0
    %242 = vmatmul.mubr.f32.gmra.mxu0 %v175
    %v243 = vpop.f32.mrf.mxu0
    %v244 = vadd.f32 %v172, %v243
    %v245 = vpop.f32.mrf.mxu0
    %v246 = vadd.f32 %v172, %v245
    %247 = vdwg.mxu0
    %v250 = vcombine.low %v244, %v246
    %s252 = scalar_lea.vmem [#allocation9], 8
    %253 = vst [vmem:[%s252] sm:$0xff] %v250
    // Predicated region
    $region34: #{tpu_custom_call.1} parent=1 // pred_check
      _
    $region35: #{tpu_custom_call.1} parent=1 // pred_check_branch
      %255 = sbr.rel (0) target = $region37
    $region36: #{tpu_custom_call.1} parent=1 // pred_region
      %s257 = ssub.s32 256, 256
      %258 = vsyncadd [#allocation4], %s257
      %s259 = sshll.u32 [#allocation9], 4
      %s260 = int_to_ptr.vmem [resolvable:$true] %s259
      %265 = dma.vmem_to_hbm [thread:$0]  %s260, 256, %s5, [#allocation4], 128, 128, 8
    $region37: #{tpu_custom_call.1} parent=1 // pred_fallthru
      _
    // Predicated region
    $region38: #{tpu_custom_call.1} parent=1 // pred_check
      _
    $region39: #{tpu_custom_call.1} parent=1 // pred_check_branch
      %267 = sbr.rel (0) target = $region41
    $region40: #{tpu_custom_call.1} parent=1 // pred_region
      %268 = dma.done [#allocation4], 256
    $region41: #{tpu_custom_call.1} parent=1 // pred_fallthru
      _
    %269 = vsyncpa [#allocation3], 1
    %270 = vsyncpa [#allocation4], 1
    %271 = vsyncpa [#allocation5], 1
    %272 = vsyncpa [#allocation7], 1

</llo_original>
